<compile_context>
chip_gen: v7x
topology: tpu7x:2x2x1
jax: 0.10.0
libtpu: 0.0.40
codegen_flags: <defaults>
</compile_context>

<pallas_src>
import jax
import jax.numpy as jnp
from jax.experimental import pallas as pl
from jax.experimental.pallas import tpu as pltpu


def _c620_sf_kernel(c_ref, f_ref, w1c_ref, w1f_ref, b1_ref, w2_ref, b2_ref,
                    w3_ref, b3_ref, o_ref):
    # c_ref: [TB, Cd], f_ref: [TB, Fd]
    # w1c: [Cd, H] bf16, w1f: [Fd, H] bf16, w2: [H, H] bf16, w3: [H, O] bf16
    # b1/b2: [1, H] f32, b3: [1, O] f32
    h = (jnp.dot(c_ref[...].astype(jnp.bfloat16), w1c_ref[...],
                 preferred_element_type=jnp.float32)
         + jnp.dot(f_ref[...].astype(jnp.bfloat16), w1f_ref[...],
                   preferred_element_type=jnp.float32)
         + b1_ref[...])
    h = jnp.maximum(h, 0.0)
    h = jnp.dot(h.astype(jnp.bfloat16), w2_ref[...],
                preferred_element_type=jnp.float32) + b2_ref[...]
    h = jnp.maximum(h, 0.0)
    z = jnp.dot(h.astype(jnp.bfloat16), w3_ref[...],
                preferred_element_type=jnp.float32) + b3_ref[...]
    # sigmoid(z) = 1 / (1 + exp(-z)); exp + approx reciprocal both on the EUP.
    o_ref[...] = pl.reciprocal(1.0 + jnp.exp(-z), approx=True).astype(o_ref.dtype)


def c620_sf_forward(c, f, params, *, f_dim=41, max_tile_b=512):
    """Pallas implementation of C620_SF.forward(c, f) -> 4-tuple of [B, f_dim]."""
    w1, b1, w2, b2, w3, b3 = params
    B, c_dim = c.shape
    fd = f.shape[1]
    H = w1.shape[1]
    O = w3.shape[1]

    # Split W1 so concat(c, f) @ W1 == c @ W1c + f @ W1f (concat fused away).
    w1c = w1[:c_dim].astype(jnp.bfloat16)
    w1f = w1[c_dim:].astype(jnp.bfloat16)
    w2b = w2.astype(jnp.bfloat16)
    w3b = w3.astype(jnp.bfloat16)
    b1r = b1.reshape(1, H).astype(jnp.float32)
    b2r = b2.reshape(1, H).astype(jnp.float32)
    b3r = b3.reshape(1, O).astype(jnp.float32)
    cf = c.astype(jnp.float32)
    ff = f.astype(jnp.float32)

    # Batch tile selection (sublane-aligned, no explicit padding of inputs):
    #  * large B: tiles of max_tile_b rows,
    #  * moderate B: two tiles so both v7x TensorCores get a grid step,
    #  * tiny B: a single tile (step overhead dominates any split).
    if B > max_tile_b:
        tb = max_tile_b
    elif B >= 128:
        tb = max(8, pl.cdiv(pl.cdiv(B, 2), 8) * 8)
    else:
        tb = max(8, pl.cdiv(B, 8) * 8)
    grid = (pl.cdiv(B, tb),)   # ragged final block handled by Pallas masking

    out = pl.pallas_call(
        _c620_sf_kernel,
        out_shape=jax.ShapeDtypeStruct((B, O), jnp.float32),
        grid=grid,
        in_specs=[
            pl.BlockSpec((tb, c_dim), lambda i: (i, 0)),   # c   (batch-tiled)
            pl.BlockSpec((tb, fd), lambda i: (i, 0)),      # f   (batch-tiled)
            pl.BlockSpec((c_dim, H), lambda i: (0, 0)),    # W1c (resident)
            pl.BlockSpec((fd, H), lambda i: (0, 0)),       # W1f (resident)
            pl.BlockSpec((1, H), lambda i: (0, 0)),        # b1
            pl.BlockSpec((H, H), lambda i: (0, 0)),        # W2  (resident)
            pl.BlockSpec((1, H), lambda i: (0, 0)),        # b2
            pl.BlockSpec((H, O), lambda i: (0, 0)),        # W3  (resident)
            pl.BlockSpec((1, O), lambda i: (0, 0)),        # b3
        ],
        out_specs=pl.BlockSpec((tb, O), lambda i: (i, 0)),
        compiler_params=pltpu.CompilerParams(
            dimension_semantics=("parallel",)),
    )(cf, ff, w1c, w1f, b1r, w2b, b2r, w3b, b3r)

    return (out[:, :f_dim],
            out[:, f_dim:2 * f_dim],
            out[:, 2 * f_dim:3 * f_dim],
            out[:, 3 * f_dim:])


def _reference(c, f, params, f_dim=41):
    w1, b1, w2, b2, w3, b3 = params
    x = jnp.concatenate([c, f], axis=-1)
    h = jnp.maximum(x @ w1 + b1, 0.0)
    h = jnp.maximum(h @ w2 + b2, 0.0)
    sp = jax.nn.sigmoid(h @ w3 + b3)
    return (sp[:, :f_dim], sp[:, f_dim:2 * f_dim],
            sp[:, 2 * f_dim:3 * f_dim], sp[:, 3 * f_dim:])


if __name__ == "__main__":
    key = jax.random.PRNGKey(0)
    kc, kf, k1, k2, k3, k4, k5, k6 = jax.random.split(key, 8)

    B = 8
    c_dim, f_dim, h_dim = 3, 41, 256
    o_dim = f_dim * 4

    c = jax.random.normal(kc, (B, c_dim), dtype=jnp.float32)
    f = jax.random.normal(kf, (B, f_dim), dtype=jnp.float32)

    def init_linear(kw, kb, din, dout):
        bound = 1.0 / (din ** 0.5)
        w = jax.random.uniform(kw, (din, dout), jnp.float32, -bound, bound)
        b = jax.random.uniform(kb, (dout,), jnp.float32, -bound, bound)
        return w, b

    w1, b1 = init_linear(k1, k2, c_dim + f_dim, h_dim)
    w2, b2 = init_linear(k3, k4, h_dim, h_dim)
    w3, b3 = init_linear(k5, k6, h_dim, o_dim)
    params = (w1, b1, w2, b2, w3, b3)

    fwd = jax.jit(lambda c, f: c620_sf_forward(c, f, params, f_dim=f_dim))
    outs = fwd(c, f)
    jax.block_until_ready(outs)

    refs = _reference(c, f, params, f_dim=f_dim)
    for o, r in zip(outs, refs):
        assert o.shape == (B, f_dim), o.shape
        # Tolerance loosened for bf16 MXU inputs + approx reciprocal.
        assert jnp.allclose(o, r, atol=2e-2, rtol=2e-2), float(jnp.max(jnp.abs(o - r)))

    print("KERNEL_OK")
</pallas_src>

<mosaic_0001>
module attributes {stable_mosaic.version = 11 : i64} {
  func.func @_c620_sf_kernel(%arg0: i32, %arg1: memref<8x3xf32, #tpu.memory_space<vmem>>, %arg2: memref<8x41xf32, #tpu.memory_space<vmem>>, %arg3: memref<3x256xbf16, #tpu.memory_space<vmem>>, %arg4: memref<41x256xbf16, #tpu.memory_space<vmem>>, %arg5: memref<1x256xf32, #tpu.memory_space<vmem>>, %arg6: memref<256x256xbf16, #tpu.memory_space<vmem>>, %arg7: memref<1x256xf32, #tpu.memory_space<vmem>>, %arg8: memref<256x164xbf16, #tpu.memory_space<vmem>>, %arg9: memref<1x164xf32, #tpu.memory_space<vmem>>, %arg10: memref<8x164xf32, #tpu.memory_space<vmem>>) attributes {dimension_semantics = [#tpu.dimension_semantics<parallel>], iteration_bounds = array<i64: 1>, scalar_prefetch = 0 : i64, scratch_operands = 0 : i64, tpu.core_type = #tpu.core_type<tc>, window_params = [{transform_indices = @transform_0, window_bounds = array<i64: 8, 3>}, {transform_indices = @transform_1, window_bounds = array<i64: 8, 41>}, {pipeline_mode = #tpu.pipeline_mode<synchronous>, transform_indices = @transform_2, window_bounds = array<i64: 3, 256>}, {pipeline_mode = #tpu.pipeline_mode<synchronous>, transform_indices = @transform_3, window_bounds = array<i64: 41, 256>}, {pipeline_mode = #tpu.pipeline_mode<synchronous>, transform_indices = @transform_4, window_bounds = array<i64: 1, 256>}, {pipeline_mode = #tpu.pipeline_mode<synchronous>, transform_indices = @transform_5, window_bounds = array<i64: 256, 256>}, {pipeline_mode = #tpu.pipeline_mode<synchronous>, transform_indices = @transform_6, window_bounds = array<i64: 1, 256>}, {pipeline_mode = #tpu.pipeline_mode<synchronous>, transform_indices = @transform_7, window_bounds = array<i64: 256, 164>}, {pipeline_mode = #tpu.pipeline_mode<synchronous>, transform_indices = @transform_8, window_bounds = array<i64: 1, 164>}, {transform_indices = @transform_9, window_bounds = array<i64: 8, 164>}]} {
    %c0 = arith.constant 0 : index
    %c0_0 = arith.constant 0 : index
    %0 = vector.load %arg1[%c0, %c0_0] : memref<8x3xf32, #tpu.memory_space<vmem>>, vector<8x3xf32>
    %1 = arith.truncf %0 : vector<8x3xf32> to vector<8x3xbf16>
    %c0_1 = arith.constant 0 : index
    %c0_2 = arith.constant 0 : index
    %2 = vector.load %arg3[%c0_1, %c0_2] : memref<3x256xbf16, #tpu.memory_space<vmem>>, vector<3x256xbf16>
    %cst = arith.constant dense<0.000000e+00> : vector<8x256xf32>
    %3 = tpu.matmul %1, %2, %cst {dimension_numbers = #tpu.dot_dimension_numbers<[1], [0], [0], [1], [0, 0, 1, 1], [], []>} : vector<8x3xbf16>, vector<3x256xbf16>, vector<8x256xf32> -> vector<8x256xf32>
    %c0_3 = arith.constant 0 : index
    %c0_4 = arith.constant 0 : index
    %4 = vector.load %arg2[%c0_3, %c0_4] : memref<8x41xf32, #tpu.memory_space<vmem>>, vector<8x41xf32>
    %5 = arith.truncf %4 : vector<8x41xf32> to vector<8x41xbf16>
    %c0_5 = arith.constant 0 : index
    %c0_6 = arith.constant 0 : index
    %6 = vector.load %arg4[%c0_5, %c0_6] : memref<41x256xbf16, #tpu.memory_space<vmem>>, vector<41x256xbf16>
    %cst_7 = arith.constant dense<0.000000e+00> : vector<8x256xf32>
    %7 = tpu.matmul %5, %6, %cst_7 {dimension_numbers = #tpu.dot_dimension_numbers<[1], [0], [0], [1], [0, 0, 1, 1], [], []>} : vector<8x41xbf16>, vector<41x256xbf16>, vector<8x256xf32> -> vector<8x256xf32>
    %8 = arith.addf %3, %7 : vector<8x256xf32>
    %c0_8 = arith.constant 0 : index
    %c0_9 = arith.constant 0 : index
    %9 = vector.load %arg5[%c0_8, %c0_9] : memref<1x256xf32, #tpu.memory_space<vmem>>, vector<1x256xf32>
    %10 = vector.broadcast %9 : vector<1x256xf32> to vector<8x256xf32>
    %11 = arith.addf %8, %10 : vector<8x256xf32>
    %cst_10 = arith.constant 0.000000e+00 : f32
    %12 = vector.broadcast %cst_10 : f32 to vector<8x256xf32>
    %13 = arith.maximumf %11, %12 : vector<8x256xf32>
    %14 = arith.truncf %13 : vector<8x256xf32> to vector<8x256xbf16>
    %c0_11 = arith.constant 0 : index
    %c0_12 = arith.constant 0 : index
    %15 = vector.load %arg6[%c0_11, %c0_12] : memref<256x256xbf16, #tpu.memory_space<vmem>>, vector<256x256xbf16>
    %cst_13 = arith.constant dense<0.000000e+00> : vector<8x256xf32>
    %16 = tpu.matmul %14, %15, %cst_13 {dimension_numbers = #tpu.dot_dimension_numbers<[1], [0], [0], [1], [0, 0, 1, 1], [], []>} : vector<8x256xbf16>, vector<256x256xbf16>, vector<8x256xf32> -> vector<8x256xf32>
    %c0_14 = arith.constant 0 : index
    %c0_15 = arith.constant 0 : index
    %17 = vector.load %arg7[%c0_14, %c0_15] : memref<1x256xf32, #tpu.memory_space<vmem>>, vector<1x256xf32>
    %18 = vector.broadcast %17 : vector<1x256xf32> to vector<8x256xf32>
    %19 = arith.addf %16, %18 : vector<8x256xf32>
    %cst_16 = arith.constant 0.000000e+00 : f32
    %20 = vector.broadcast %cst_16 : f32 to vector<8x256xf32>
    %21 = arith.maximumf %19, %20 : vector<8x256xf32>
    %22 = arith.truncf %21 : vector<8x256xf32> to vector<8x256xbf16>
    %c0_17 = arith.constant 0 : index
    %c0_18 = arith.constant 0 : index
    %23 = vector.load %arg8[%c0_17, %c0_18] : memref<256x164xbf16, #tpu.memory_space<vmem>>, vector<256x164xbf16>
    %cst_19 = arith.constant dense<0.000000e+00> : vector<8x164xf32>
    %24 = tpu.matmul %22, %23, %cst_19 {dimension_numbers = #tpu.dot_dimension_numbers<[1], [0], [0], [1], [0, 0, 1, 1], [], []>} : vector<8x256xbf16>, vector<256x164xbf16>, vector<8x164xf32> -> vector<8x164xf32>
    %c0_20 = arith.constant 0 : index
    %c0_21 = arith.constant 0 : index
    %25 = vector.load %arg9[%c0_20, %c0_21] : memref<1x164xf32, #tpu.memory_space<vmem>>, vector<1x164xf32>
    %26 = vector.broadcast %25 : vector<1x164xf32> to vector<8x164xf32>
    %27 = arith.addf %24, %26 : vector<8x164xf32>
    %cst_22 = arith.constant 0.000000e+00 : f32
    %28 = vector.broadcast %cst_22 : f32 to vector<8x164xf32>
    %29 = arith.subf %28, %27 : vector<8x164xf32>
    %30 = math.exp %29 : vector<8x164xf32>
    %cst_23 = arith.constant 1.000000e+00 : f32
    %31 = vector.broadcast %cst_23 : f32 to vector<8x164xf32>
    %32 = arith.addf %31, %30 : vector<8x164xf32>
    %33 = tpu.reciprocal %32 {approx = true} : vector<8x164xf32> -> vector<8x164xf32>
    %c0_24 = arith.constant 0 : index
    %c0_25 = arith.constant 0 : index
    %34 = vector.load %arg10[%c0_24, %c0_25] : memref<8x164xf32, #tpu.memory_space<vmem>>, vector<8x164xf32>
    tpu.vector_store %arg10[%c0_24, %c0_25], %33 {strides = array<i32>} : memref<8x164xf32, #tpu.memory_space<vmem>>, vector<8x164xf32>,
    return
  }
  func.func @transform_0(%arg0: i32) -> (i32, i32) {
    %c0_i32 = arith.constant 0 : i32
    %c0_i32_0 = arith.constant 0 : i32
    return %arg0, %c0_i32 : i32, i32
  }
  func.func @transform_1(%arg0: i32) -> (i32, i32) {
    %c0_i32 = arith.constant 0 : i32
    %c0_i32_0 = arith.constant 0 : i32
    return %arg0, %c0_i32 : i32, i32
  }
  func.func @transform_2(%arg0: i32) -> (i32, i32) {
    %c0_i32 = arith.constant 0 : i32
    %c0_i32_0 = arith.constant 0 : i32
    %c0_i32_1 = arith.constant 0 : i32
    return %c0_i32, %c0_i32_0 : i32, i32
  }
  func.func @transform_3(%arg0: i32) -> (i32, i32) {
    %c0_i32 = arith.constant 0 : i32
    %c0_i32_0 = arith.constant 0 : i32
    %c0_i32_1 = arith.constant 0 : i32
    return %c0_i32, %c0_i32_0 : i32, i32
  }
  func.func @transform_4(%arg0: i32) -> (i32, i32) {
    %c0_i32 = arith.constant 0 : i32
    %c0_i32_0 = arith.constant 0 : i32
    %c0_i32_1 = arith.constant 0 : i32
    return %c0_i32, %c0_i32_0 : i32, i32
  }
  func.func @transform_5(%arg0: i32) -> (i32, i32) {
    %c0_i32 = arith.constant 0 : i32
    %c0_i32_0 = arith.constant 0 : i32
    %c0_i32_1 = arith.constant 0 : i32
    return %c0_i32, %c0_i32_0 : i32, i32
  }
  func.func @transform_6(%arg0: i32) -> (i32, i32) {
    %c0_i32 = arith.constant 0 : i32
    %c0_i32_0 = arith.constant 0 : i32
    %c0_i32_1 = arith.constant 0 : i32
    return %c0_i32, %c0_i32_0 : i32, i32
  }
  func.func @transform_7(%arg0: i32) -> (i32, i32) {
    %c0_i32 = arith.constant 0 : i32
    %c0_i32_0 = arith.constant 0 : i32
    %c0_i32_1 = arith.constant 0 : i32
    return %c0_i32, %c0_i32_0 : i32, i32
  }
  func.func @transform_8(%arg0: i32) -> (i32, i32) {
    %c0_i32 = arith.constant 0 : i32
    %c0_i32_0 = arith.constant 0 : i32
    %c0_i32_1 = arith.constant 0 : i32
    return %c0_i32, %c0_i32_0 : i32, i32
  }
  func.func @transform_9(%arg0: i32) -> (i32, i32) {
    %c0_i32 = arith.constant 0 : i32
    %c0_i32_0 = arith.constant 0 : i32
    return %arg0, %c0_i32 : i32, i32
  }
}

</mosaic_0001>

<llo_original>
// kernel: _lambda_.1
$region0: #{_lambda_.1}
  #allocation0 [shape = 'u32[]', space=smem, size = 0x4, offset = 0x4, fixed_abs, tag = 'smem constant byte address 0x4 - core index']
  #allocation1 [shape = 'u32[144,128]{1,0:T(1,128)}', space=vmem, size = 0x12000, scoped, tag = 'internal scratch']
  %s0 = inlined_call_operand.vmem [shape: f32[8,3], index: 0, kind: input, shape index: {}]
  %s1 = inlined_call_operand.vmem [shape: f32[8,41], index: 1, kind: input, shape index: {}]
  %s2 = inlined_call_operand.vmem [shape: bf16[3,256], index: 2, kind: input, shape index: {}]
  %s3 = inlined_call_operand.vmem [shape: bf16[41,256], index: 3, kind: input, shape index: {}]
  %s4 = inlined_call_operand.vmem [shape: f32[1,256], index: 4, kind: input, shape index: {}]
  %s5 = inlined_call_operand.vmem [shape: bf16[256,256], index: 5, kind: input, shape index: {}]
  %s6 = inlined_call_operand.vmem [shape: f32[1,256], index: 6, kind: input, shape index: {}]
  %s7 = inlined_call_operand.vmem [shape: bf16[256,164], index: 7, kind: input, shape index: {}]
  %s8 = inlined_call_operand.vmem [shape: f32[1,164], index: 8, kind: input, shape index: {}]
  %s9 = inlined_call_operand.vmem [shape: f32[8,164], index: 9, kind: output, shape index: {}]
  %s10 = sld [smem:[#allocation0]]
  $region46: #{_lambda_.1} parent=0
    _
  %s12 = ssub.s32 1, %s10
  %s13 = scalar_select 0, %s12, %s10
  // Predicated region
  $region2: #{_lambda_.1} parent=0 // pred_check
    _
  $region3: #{_lambda_.1} parent=0 // pred_check_branch
    %15 = sbr.rel (0) target = $region5
  $region4: #{_lambda_.1} parent=0 // pred_region
    _
  $region5: #{_lambda_.1} parent=0 // pred_fallthru
    _
  // Predicated region
  $region6: #{_lambda_.1} parent=0 // pred_check
    _
  $region7: #{_lambda_.1} parent=0 // pred_check_branch
    %17 = sbr.rel (0) target = $region9
  $region8: #{_lambda_.1} parent=0 // pred_region
    _
  $region9: #{_lambda_.1} parent=0 // pred_fallthru
    _
  // Predicated region
  $region10: #{_lambda_.1} parent=0 // pred_check
    _
  $region11: #{_lambda_.1} parent=0 // pred_check_branch
    %19 = sbr.rel (0) target = $region13
  $region12: #{_lambda_.1} parent=0 // pred_region
    _
  $region13: #{_lambda_.1} parent=0 // pred_fallthru
    _
  // Predicated region
  $region14: #{_lambda_.1} parent=0 // pred_check
    _
  $region15: #{_lambda_.1} parent=0 // pred_check_branch
    %21 = sbr.rel (0) target = $region17
  $region16: #{_lambda_.1} parent=0 // pred_region
    _
  $region17: #{_lambda_.1} parent=0 // pred_fallthru
    _
  // Predicated region
  $region18: #{_lambda_.1} parent=0 // pred_check
    _
  $region19: #{_lambda_.1} parent=0 // pred_check_branch
    %23 = sbr.rel (0) target = $region21
  $region20: #{_lambda_.1} parent=0 // pred_region
    _
  $region21: #{_lambda_.1} parent=0 // pred_fallthru
    _
  // Predicated region
  $region22: #{_lambda_.1} parent=0 // pred_check
    _
  $region23: #{_lambda_.1} parent=0 // pred_check_branch
    %25 = sbr.rel (0) target = $region25
  $region24: #{_lambda_.1} parent=0 // pred_region
    _
  $region25: #{_lambda_.1} parent=0 // pred_fallthru
    _
  // Predicated region
  $region26: #{_lambda_.1} parent=0 // pred_check
    _
  $region27: #{_lambda_.1} parent=0 // pred_check_branch
    %27 = sbr.rel (0) target = $region29
  $region28: #{_lambda_.1} parent=0 // pred_region
    _
  $region29: #{_lambda_.1} parent=0 // pred_fallthru
    _
  // Predicated region
  $region30: #{_lambda_.1} parent=0 // pred_check
    _
  $region31: #{_lambda_.1} parent=0 // pred_check_branch
    %29 = sbr.rel (0) target = $region33
  $region32: #{_lambda_.1} parent=0 // pred_region
    _
  $region33: #{_lambda_.1} parent=0 // pred_fallthru
    _
  // Predicated region
  $region34: #{_lambda_.1} parent=0 // pred_check
    _
  $region35: #{_lambda_.1} parent=0 // pred_check_branch
    %31 = sbr.rel (0) target = $region37
  $region36: #{_lambda_.1} parent=0 // pred_region
    _
  $region37: #{_lambda_.1} parent=0 // pred_fallthru
    _
  %v33 = vld [vmem:[%s0] sm:$0xff]
  %v34 = vpack.c.bf16 %v33, %v33
  %v35 = vld [vmem:[%s2] sm:$0xf]
  %v36 = vld [vmem:[%s1] sm:$0xff]
  %v37 = vpack.c.bf16 %v36, %v36
  %v38 = vld [vmem:[%s3] sm:$0xff]
  %v39 = vld [vmem:[%s3 + $0x8] sm:$0xff]
  %v40 = vld [vmem:[%s3 + $0x10] sm:$0xff]
  %v41 = vld [vmem:[%s3 + $0x18] sm:$0xff]
  %v42 = vld [vmem:[%s3 + $0x20] sm:$0xff]
  %v43 = vld [vmem:[%s3 + $0x28] sm:$0x11]
  %v50 = vunpack.c.l.b16 %v38
  %v51 = vunpack.c.h.b16 %v38
  %v52 = vunpack.c.l.b16 %v39
  %v53 = vunpack.c.h.b16 %v39
  %v54 = vunpack.c.l.b16 %v40
  %v55 = vunpack.c.h.b16 %v40
  %v56 = vunpack.c.l.b16 %v41
  %v57 = vunpack.c.h.b16 %v41
  %v58 = vunpack.c.l.b16 %v42
  %v59 = vunpack.c.h.b16 %v42
  %v60 = vunpack.c.l.b16 %v43
  %v61 = vunpack.c.h.b16 %v43
  %v62 = vpack.c.b16 %v52, %v50
  %v63 = vpack.c.b16 %v53, %v51
  %v64 = vpack.c.b16 %v56, %v54
  %v65 = vpack.c.b16 %v57, %v55
  %v66 = vpack.c.b16 %v60, %v58
  %v67 = vpack.c.b16 %v61, %v59
  %vm72 = vcmask 334848
  %v74 = vsel %vm72, %v37, 0
  %vm76 = vcmask 1043456
  %vm77 = vcmask 1044480
  %v78 = vsel %vm76, 4294967295, 65535
  %v79 = vsel %vm77, %v78, 0
  %v81 = vand.u32 %v66, %v79
  %v84 = vand.u32 %v67, %v79
  %86 = vmatprep.subr.bf16.mxu0 %v63
  %87 = vmatpush1.bf16.msra.mxu0 %v62
  %88 = vmatprep.subr.bf16.mxu0 %v65
  %89 = vmatpush1.bf16.msra.mxu0 %v64
  %90 = vmatprep.subr.bf16.mxu0 %v84
  %91 = vmatpush1.bf16.msra.mxu0 %v81
  %92 = vmatprep.subr.bf16.mxu0 0
  %93 = vmatpush1.bf16.msra.mxu0 0
  %94 = vmatprep.subr.bf16.mxu0 0
  %95 = vmatpush1.bf16.msra.mxu0 0
  %96 = vmatprep.subr.bf16.mxu0 0
  %97 = vmatpush1.bf16.msra.mxu0 0
  %98 = vmatprep.subr.bf16.mxu0 0
  %99 = vmatpush1.bf16.msra.mxu0 0
  %100 = vmatprep.subr.bf16.mxu0 0
  %101 = vmatpush1.bf16.msra.mxu0 0
  %102 = vmatprep.subr.bf16.mxu0 0
  %103 = vmatpush1.bf16.msra.mxu0 0
  %104 = vmatprep.subr.bf16.mxu0 0
  %105 = vmatpush1.bf16.msra.mxu0 0
  %106 = vmatprep.subr.bf16.mxu0 0
  %107 = vmatpush1.bf16.msra.mxu0 0
  %108 = vmatprep.subr.bf16.mxu0 0
  %109 = vmatpush1.bf16.msra.mxu0 0
  %110 = vmatprep.subr.bf16.mxu0 0
  %111 = vmatpush1.bf16.msra.mxu0 0
  %112 = vmatprep.subr.bf16.mxu0 0
  %113 = vmatpush1.bf16.msra.mxu0 0
  %114 = vmatprep.subr.bf16.mxu0 0
  %115 = vmatpush1.bf16.msra.mxu0 0
  %116 = vmatprep.subr.bf16.mxu0 0
  %117 = vmatpush1.bf16.msra.mxu0 0
  %118 = vmatprep.mubr.bf16.mxu0 0
  %119 = vmatmul.mubr.bf16.gmra.mrb[0].mxu0 %v74
  %v120 = vpop.f32.mrb[0].mxu0
  %v121 = vadd.f32 0.0, %v120
  %v122 = vpop.f32.mrb[0].mxu0
  %v123 = vadd.f32 0.0, %v122
  %v124 = vpop.f32.mrb[0].mxu0
  %v125 = vpop.f32.mrb[0].mxu0
  %126 = vdwg.mxu0
  %v129 = vunpack.c.l.s4 1983009808
  %v130 = vunpack.c.0.s8 %v129
  %v131 = vlaneseq
  %v132 = vshrl.u32 %v131, 7
  %v133 = vsub.s32 %v130, %v132
  %v134 = vrot.slane %v35, %v133
  %v135 = vcombine.high %v134, %v134
  %vm136 = vcmask 23552
  %v138 = vsel %vm136, %v34, 0
  %vm140 = vcmask 1040384
  %vm141 = vcmask 1041408
  %v142 = vsel %vm140, 4294967295, 65535
  %v143 = vsel %vm141, %v142, 0
  %v145 = vand.u32 %v134, %v143
  %v148 = vand.u32 %v135, %v143
  %150 = vmatprep.subr.bf16.mxu0 %v148
  %151 = vmatpush1.bf16.msra.mxu0 %v145
  %152 = vmatprep.subr.bf16.mxu0 0
  %153 = vmatpush1.bf16.msra.mxu0 0
  %154 = vmatprep.subr.bf16.mxu0 0
  %155 = vmatpush1.bf16.msra.mxu0 0
  %156 = vmatprep.subr.bf16.mxu0 0
  %157 = vmatpush1.bf16.msra.mxu0 0
  %158 = vmatprep.subr.bf16.mxu0 0
  %159 = vmatpush1.bf16.msra.mxu0 0
  %160 = vmatprep.subr.bf16.mxu0 0
  %161 = vmatpush1.bf16.msra.mxu0 0
  %162 = vmatprep.subr.bf16.mxu0 0
  %163 = vmatpush1.bf16.msra.mxu0 0
  %164 = vmatprep.subr.bf16.mxu0 0
  %165 = vmatpush1.bf16.msra.mxu0 0
  %166 = vmatprep.subr.bf16.mxu0 0
  %167 = vmatpush1.bf16.msra.mxu0 0
  %168 = vmatprep.subr.bf16.mxu0 0
  %169 = vmatpush1.bf16.msra.mxu0 0
  %170 = vmatprep.subr.bf16.mxu0 0
  %171 = vmatpush1.bf16.msra.mxu0 0
  %172 = vmatprep.subr.bf16.mxu0 0
  %173 = vmatpush1.bf16.msra.mxu0 0
  %174 = vmatprep.subr.bf16.mxu0 0
  %175 = vmatpush1.bf16.msra.mxu0 0
  %176 = vmatprep.subr.bf16.mxu0 0
  %177 = vmatpush1.bf16.msra.mxu0 0
  %178 = vmatprep.subr.bf16.mxu0 0
  %179 = vmatpush1.bf16.msra.mxu0 0
  %180 = vmatprep.subr.bf16.mxu0 0
  %181 = vmatpush1.bf16.msra.mxu0 0
  %182 = vmatprep.mubr.bf16.mxu0 0
  %183 = vmatmul.mubr.bf16.gmra.mrb[0].mxu0 %v138
  %v184 = vpop.f32.mrb[0].mxu0
  %v185 = vadd.f32 %v121, %v184
  %v186 = vpop.f32.mrb[0].mxu0
  %v187 = vadd.f32 %v123, %v186
  %v188 = vpop.f32.mrb[0].mxu0
  %v189 = vpop.f32.mrb[0].mxu0
  %190 = vdwg.mxu0
  %v191 = vld [vmem:[%s4] sm:$0x3]
  %v193 = vlaneseq
  %v194 = vshrl.u32 %v193, 7
  %v195 = vsub.s32 0, %v194
  %v196 = vrot.slane %v191, %v195
  %v197 = vlaneseq
  %v198 = vshrl.u32 %v197, 7
  %v199 = vsub.s32 1, %v198
  %v200 = vrot.slane %v191, %v199
  %v203 = vadd.f32 %v185, %v196
  %v204 = vadd.f32 %v187, %v200
  %v205 = vmax.f32 %v203, 0.0
  %v206 = vmax.f32 %v204, 0.0
  %v207 = vpack.c.bf16 %v205, %v205
  %v208 = vpack.c.bf16 %v206, %v206
  %v209 = vld [vmem:[%s5] sm:$0xff]
  %v210 = vld [vmem:[%s5 + $0x8] sm:$0xff]
  %v211 = vld [vmem:[%s5 + $0x10] sm:$0xff]
  %v212 = vld [vmem:[%s5 + $0x18] sm:$0xff]
  %v213 = vld [vmem:[%s5 + $0x20] sm:$0xff]
  %v214 = vld [vmem:[%s5 + $0x28] sm:$0xff]
  %v215 = vld [vmem:[%s5 + $0x30] sm:$0xff]
  %v216 = vld [vmem:[%s5 + $0x38] sm:$0xff]
  %v217 = vld [vmem:[%s5 + $0x40] sm:$0xff]
  %v218 = vld [vmem:[%s5 + $0x48] sm:$0xff]
  %v219 = vld [vmem:[%s5 + $0x50] sm:$0xff]
  %v220 = vld [vmem:[%s5 + $0x58] sm:$0xff]
  %v221 = vld [vmem:[%s5 + $0x60] sm:$0xff]
  %v222 = vld [vmem:[%s5 + $0x68] sm:$0xff]
  %v223 = vld [vmem:[%s5 + $0x70] sm:$0xff]
  %v224 = vld [vmem:[%s5 + $0x78] sm:$0xff]
  %v225 = vld [vmem:[%s5 + $0x80] sm:$0xff]
  %v226 = vld [vmem:[%s5 + $0x88] sm:$0xff]
  %v227 = vld [vmem:[%s5 + $0x90] sm:$0xff]
  %v228 = vld [vmem:[%s5 + $0x98] sm:$0xff]
  %v229 = vld [vmem:[%s5 + $0xa0] sm:$0xff]
  %v230 = vld [vmem:[%s5 + $0xa8] sm:$0xff]
  %v231 = vld [vmem:[%s5 + $0xb0] sm:$0xff]
  %v232 = vld [vmem:[%s5 + $0xb8] sm:$0xff]
  %v233 = vld [vmem:[%s5 + $0xc0] sm:$0xff]
  %v234 = vld [vmem:[%s5 + $0xc8] sm:$0xff]
  %v235 = vld [vmem:[%s5 + $0xd0] sm:$0xff]
  %v236 = vld [vmem:[%s5 + $0xd8] sm:$0xff]
  %v237 = vld [vmem:[%s5 + $0xe0] sm:$0xff]
  %v238 = vld [vmem:[%s5 + $0xe8] sm:$0xff]
  %v239 = vld [vmem:[%s5 + $0xf0] sm:$0xff]
  %v240 = vld [vmem:[%s5 + $0xf8] sm:$0xff]
  %v241 = vld [vmem:[%s6] sm:$0x3]
  %v243 = vlaneseq
  %v244 = vshrl.u32 %v243, 7
  %v245 = vsub.s32 0, %v244
  %v246 = vrot.slane %v241, %v245
  %v247 = vlaneseq
  %v248 = vshrl.u32 %v247, 7
  %v249 = vsub.s32 1, %v248
  %v250 = vrot.slane %v241, %v249
  %v285 = vunpack.c.l.b16 %v209
  %v286 = vunpack.c.h.b16 %v209
  %v287 = vunpack.c.l.b16 %v210
  %v288 = vunpack.c.h.b16 %v210
  %v289 = vunpack.c.l.b16 %v211
  %v290 = vunpack.c.h.b16 %v211
  %v291 = vunpack.c.l.b16 %v212
  %v292 = vunpack.c.h.b16 %v212
  %v293 = vunpack.c.l.b16 %v213
  %v294 = vunpack.c.h.b16 %v213
  %v295 = vunpack.c.l.b16 %v214
  %v296 = vunpack.c.h.b16 %v214
  %v297 = vunpack.c.l.b16 %v215
  %v298 = vunpack.c.h.b16 %v215
  %v299 = vunpack.c.l.b16 %v216
  %v300 = vunpack.c.h.b16 %v216
  %v301 = vunpack.c.l.b16 %v217
  %v302 = vunpack.c.h.b16 %v217
  %v303 = vunpack.c.l.b16 %v218
  %v304 = vunpack.c.h.b16 %v218
  %v305 = vunpack.c.l.b16 %v219
  %v306 = vunpack.c.h.b16 %v219
  %v307 = vunpack.c.l.b16 %v220
  %v308 = vunpack.c.h.b16 %v220
  %v309 = vunpack.c.l.b16 %v221
  %v310 = vunpack.c.h.b16 %v221
  %v311 = vunpack.c.l.b16 %v222
  %v312 = vunpack.c.h.b16 %v222
  %v313 = vunpack.c.l.b16 %v223
  %v314 = vunpack.c.h.b16 %v223
  %v315 = vunpack.c.l.b16 %v224
  %v316 = vunpack.c.h.b16 %v224
  %v317 = vunpack.c.l.b16 %v225
  %v318 = vunpack.c.h.b16 %v225
  %v319 = vunpack.c.l.b16 %v226
  %v320 = vunpack.c.h.b16 %v226
  %v321 = vunpack.c.l.b16 %v227
  %v322 = vunpack.c.h.b16 %v227
  %v323 = vunpack.c.l.b16 %v228
  %v324 = vunpack.c.h.b16 %v228
  %v325 = vunpack.c.l.b16 %v229
  %v326 = vunpack.c.h.b16 %v229
  %v327 = vunpack.c.l.b16 %v230
  %v328 = vunpack.c.h.b16 %v230
  %v329 = vunpack.c.l.b16 %v231
  %v330 = vunpack.c.h.b16 %v231
  %v331 = vunpack.c.l.b16 %v232
  %v332 = vunpack.c.h.b16 %v232
  %v333 = vunpack.c.l.b16 %v233
  %v334 = vunpack.c.h.b16 %v233
  %v335 = vunpack.c.l.b16 %v234
  %v336 = vunpack.c.h.b16 %v234
  %v337 = vunpack.c.l.b16 %v235
  %v338 = vunpack.c.h.b16 %v235
  %v339 = vunpack.c.l.b16 %v236
  %v340 = vunpack.c.h.b16 %v236
  %v341 = vunpack.c.l.b16 %v237
  %v342 = vunpack.c.h.b16 %v237
  %v343 = vunpack.c.l.b16 %v238
  %v344 = vunpack.c.h.b16 %v238
  %v345 = vunpack.c.l.b16 %v239
  %v346 = vunpack.c.h.b16 %v239
  %v347 = vunpack.c.l.b16 %v240
  %v348 = vunpack.c.h.b16 %v240
  %v349 = vpack.c.b16 %v287, %v285
  %v350 = vpack.c.b16 %v288, %v286
  %v351 = vpack.c.b16 %v291, %v289
  %v352 = vpack.c.b16 %v292, %v290
  %v353 = vpack.c.b16 %v295, %v293
  %v354 = vpack.c.b16 %v296, %v294
  %v355 = vpack.c.b16 %v299, %v297
  %v356 = vpack.c.b16 %v300, %v298
  %v357 = vpack.c.b16 %v303, %v301
  %v358 = vpack.c.b16 %v304, %v302
  %v359 = vpack.c.b16 %v307, %v305
  %v360 = vpack.c.b16 %v308, %v306
  %v361 = vpack.c.b16 %v311, %v309
  %v362 = vpack.c.b16 %v312, %v310
  %v363 = vpack.c.b16 %v315, %v313
  %v364 = vpack.c.b16 %v316, %v314
  %v365 = vpack.c.b16 %v319, %v317
  %v366 = vpack.c.b16 %v320, %v318
  %v367 = vpack.c.b16 %v323, %v321
  %v368 = vpack.c.b16 %v324, %v322
  %v369 = vpack.c.b16 %v327, %v325
  %v370 = vpack.c.b16 %v328, %v326
  %v371 = vpack.c.b16 %v331, %v329
  %v372 = vpack.c.b16 %v332, %v330
  %v373 = vpack.c.b16 %v335, %v333
  %v374 = vpack.c.b16 %v336, %v334
  %v375 = vpack.c.b16 %v339, %v337
  %v376 = vpack.c.b16 %v340, %v338
  %v377 = vpack.c.b16 %v343, %v341
  %v378 = vpack.c.b16 %v344, %v342
  %v379 = vpack.c.b16 %v347, %v345
  %v380 = vpack.c.b16 %v348, %v346
  %413 = vmatprep.subr.bf16.mxu0 %v350
  %414 = vmatpush1.bf16.msra.mxu0 %v349
  %415 = vmatprep.subr.bf16.mxu0 %v352
  %416 = vmatpush1.bf16.msra.mxu0 %v351
  %417 = vmatprep.subr.bf16.mxu0 %v354
  %418 = vmatpush1.bf16.msra.mxu0 %v353
  %419 = vmatprep.subr.bf16.mxu0 %v356
  %420 = vmatpush1.bf16.msra.mxu0 %v355
  %421 = vmatprep.subr.bf16.mxu0 %v358
  %422 = vmatpush1.bf16.msra.mxu0 %v357
  %423 = vmatprep.subr.bf16.mxu0 %v360
  %424 = vmatpush1.bf16.msra.mxu0 %v359
  %425 = vmatprep.subr.bf16.mxu0 %v362
  %426 = vmatpush1.bf16.msra.mxu0 %v361
  %427 = vmatprep.subr.bf16.mxu0 %v364
  %428 = vmatpush1.bf16.msra.mxu0 %v363
  %429 = vmatprep.subr.bf16.mxu0 %v366
  %430 = vmatpush1.bf16.msra.mxu0 %v365
  %431 = vmatprep.subr.bf16.mxu0 %v368
  %432 = vmatpush1.bf16.msra.mxu0 %v367
  %433 = vmatprep.subr.bf16.mxu0 %v370
  %434 = vmatpush1.bf16.msra.mxu0 %v369
  %435 = vmatprep.subr.bf16.mxu0 %v372
  %436 = vmatpush1.bf16.msra.mxu0 %v371
  %437 = vmatprep.subr.bf16.mxu0 %v374
  %438 = vmatpush1.bf16.msra.mxu0 %v373
  %439 = vmatprep.subr.bf16.mxu0 %v376
  %440 = vmatpush1.bf16.msra.mxu0 %v375
  %441 = vmatprep.subr.bf16.mxu0 %v378
  %442 = vmatpush1.bf16.msra.mxu0 %v377
  %443 = vmatprep.subr.bf16.mxu0 %v380
  %444 = vmatpush1.bf16.msra.mxu0 %v379
  %445 = vmatprep.mubr.bf16.mxu0 %v208
  %446 = vmatmul.mubr.bf16.gmra.mrb[0].mxu0 %v207
  %v447 = vpop.f32.mrb[0].mxu0
  %v448 = vadd.f32 %v246, %v447
  %v449 = vpop.f32.mrb[0].mxu0
  %v450 = vadd.f32 %v250, %v449
  %v451 = vpop.f32.mrb[0].mxu0
  %v452 = vpop.f32.mrb[0].mxu0
  %453 = vdwg.mxu0
  %v454 = vmax.f32 %v448, 0.0
  %v455 = vmax.f32 %v450, 0.0
  %v456 = vpack.c.bf16 %v454, %v454
  %v457 = vpack.c.bf16 %v455, %v455
  %v458 = vld [vmem:[%s7] sm:$0xff]
  %v459 = vld [vmem:[%s7 + $0x8] sm:$0xff]
  %v460 = vld [vmem:[%s7 + $0x10] sm:$0xff]
  %v461 = vld [vmem:[%s7 + $0x18] sm:$0xff]
  %v462 = vld [vmem:[%s7 + $0x20] sm:$0xff]
  %v463 = vld [vmem:[%s7 + $0x28] sm:$0xff]
  %v464 = vld [vmem:[%s7 + $0x30] sm:$0xff]
  %v465 = vld [vmem:[%s7 + $0x38] sm:$0xff]
  %v466 = vld [vmem:[%s7 + $0x40] sm:$0xff]
  %v467 = vld [vmem:[%s7 + $0x48] sm:$0xff]
  %v468 = vld [vmem:[%s7 + $0x50] sm:$0xff]
  %v469 = vld [vmem:[%s7 + $0x58] sm:$0xff]
  %v470 = vld [vmem:[%s7 + $0x60] sm:$0xff]
  %v471 = vld [vmem:[%s7 + $0x68] sm:$0xff]
  %v472 = vld [vmem:[%s7 + $0x70] sm:$0xff]
  %v473 = vld [vmem:[%s7 + $0x78] sm:$0xff]
  %v474 = vld [vmem:[%s7 + $0x80] sm:$0xff]
  %v475 = vld [vmem:[%s7 + $0x88] sm:$0xff]
  %v476 = vld [vmem:[%s7 + $0x90] sm:$0xff]
  %v477 = vld [vmem:[%s7 + $0x98] sm:$0xff]
  %v478 = vld [vmem:[%s7 + $0xa0] sm:$0xff]
  %v479 = vld [vmem:[%s7 + $0xa8] sm:$0xff]
  %v480 = vld [vmem:[%s7 + $0xb0] sm:$0xff]
  %v481 = vld [vmem:[%s7 + $0xb8] sm:$0xff]
  %v482 = vld [vmem:[%s7 + $0xc0] sm:$0xff]
  %v483 = vld [vmem:[%s7 + $0xc8] sm:$0xff]
  %v484 = vld [vmem:[%s7 + $0xd0] sm:$0xff]
  %v485 = vld [vmem:[%s7 + $0xd8] sm:$0xff]
  %v486 = vld [vmem:[%s7 + $0xe0] sm:$0xff]
  %v487 = vld [vmem:[%s7 + $0xe8] sm:$0xff]
  %v488 = vld [vmem:[%s7 + $0xf0] sm:$0xff]
  %v489 = vld [vmem:[%s7 + $0xf8] sm:$0xff]
  %v490 = vld [vmem:[%s8] sm:$0x3]
  %v492 = vlaneseq
  %v493 = vshrl.u32 %v492, 7
  %v494 = vsub.s32 0, %v493
  %v495 = vrot.slane %v490, %v494
  %v496 = vlaneseq
  %v497 = vshrl.u32 %v496, 7
  %v498 = vsub.s32 1, %v497
  %v499 = vrot.slane %v490, %v498
  %v534 = vunpack.c.l.b16 %v458
  %v535 = vunpack.c.h.b16 %v458
  %v536 = vunpack.c.l.b16 %v459
  %v537 = vunpack.c.h.b16 %v459
  %v538 = vunpack.c.l.b16 %v460
  %v539 = vunpack.c.h.b16 %v460
  %v540 = vunpack.c.l.b16 %v461
  %v541 = vunpack.c.h.b16 %v461
  %v542 = vunpack.c.l.b16 %v462
  %v543 = vunpack.c.h.b16 %v462
  %v544 = vunpack.c.l.b16 %v463
  %v545 = vunpack.c.h.b16 %v463
  %v546 = vunpack.c.l.b16 %v464
  %v547 = vunpack.c.h.b16 %v464
  %v548 = vunpack.c.l.b16 %v465
  %v549 = vunpack.c.h.b16 %v465
  %v550 = vunpack.c.l.b16 %v466
  %v551 = vunpack.c.h.b16 %v466
  %v552 = vunpack.c.l.b16 %v467
  %v553 = vunpack.c.h.b16 %v467
  %v554 = vunpack.c.l.b16 %v468
  %v555 = vunpack.c.h.b16 %v468
  %v556 = vunpack.c.l.b16 %v469
  %v557 = vunpack.c.h.b16 %v469
  %v558 = vunpack.c.l.b16 %v470
  %v559 = vunpack.c.h.b16 %v470
  %v560 = vunpack.c.l.b16 %v471
  %v561 = vunpack.c.h.b16 %v471
  %v562 = vunpack.c.l.b16 %v472
  %v563 = vunpack.c.h.b16 %v472
  %v564 = vunpack.c.l.b16 %v473
  %v565 = vunpack.c.h.b16 %v473
  %v566 = vunpack.c.l.b16 %v474
  %v567 = vunpack.c.h.b16 %v474
  %v568 = vunpack.c.l.b16 %v475
  %v569 = vunpack.c.h.b16 %v475
  %v570 = vunpack.c.l.b16 %v476
  %v571 = vunpack.c.h.b16 %v476
  %v572 = vunpack.c.l.b16 %v477
  %v573 = vunpack.c.h.b16 %v477
  %v574 = vunpack.c.l.b16 %v478
  %v575 = vunpack.c.h.b16 %v478
  %v576 = vunpack.c.l.b16 %v479
  %v577 = vunpack.c.h.b16 %v479
  %v578 = vunpack.c.l.b16 %v480
  %v579 = vunpack.c.h.b16 %v480
  %v580 = vunpack.c.l.b16 %v481
  %v581 = vunpack.c.h.b16 %v481
  %v582 = vunpack.c.l.b16 %v482
  %v583 = vunpack.c.h.b16 %v482
  %v584 = vunpack.c.l.b16 %v483
  %v585 = vunpack.c.h.b16 %v483
  %v586 = vunpack.c.l.b16 %v484
  %v587 = vunpack.c.h.b16 %v484
  %v588 = vunpack.c.l.b16 %v485
  %v589 = vunpack.c.h.b16 %v485
  %v590 = vunpack.c.l.b16 %v486
  %v591 = vunpack.c.h.b16 %v486
  %v592 = vunpack.c.l.b16 %v487
  %v593 = vunpack.c.h.b16 %v487
  %v594 = vunpack.c.l.b16 %v488
  %v595 = vunpack.c.h.b16 %v488
  %v596 = vunpack.c.l.b16 %v489
  %v597 = vunpack.c.h.b16 %v489
  %v598 = vpack.c.b16 %v536, %v534
  %v599 = vpack.c.b16 %v537, %v535
  %v600 = vpack.c.b16 %v540, %v538
  %v601 = vpack.c.b16 %v541, %v539
  %v602 = vpack.c.b16 %v544, %v542
  %v603 = vpack.c.b16 %v545, %v543
  %v604 = vpack.c.b16 %v548, %v546
  %v605 = vpack.c.b16 %v549, %v547
  %v606 = vpack.c.b16 %v552, %v550
  %v607 = vpack.c.b16 %v553, %v551
  %v608 = vpack.c.b16 %v556, %v554
  %v609 = vpack.c.b16 %v557, %v555
  %v610 = vpack.c.b16 %v560, %v558
  %v611 = vpack.c.b16 %v561, %v559
  %v612 = vpack.c.b16 %v564, %v562
  %v613 = vpack.c.b16 %v565, %v563
  %v614 = vpack.c.b16 %v568, %v566
  %v615 = vpack.c.b16 %v569, %v567
  %v616 = vpack.c.b16 %v572, %v570
  %v617 = vpack.c.b16 %v573, %v571
  %v618 = vpack.c.b16 %v576, %v574
  %v619 = vpack.c.b16 %v577, %v575
  %v620 = vpack.c.b16 %v580, %v578
  %v621 = vpack.c.b16 %v581, %v579
  %v622 = vpack.c.b16 %v584, %v582
  %v623 = vpack.c.b16 %v585, %v583
  %v624 = vpack.c.b16 %v588, %v586
  %v625 = vpack.c.b16 %v589, %v587
  %v626 = vpack.c.b16 %v592, %v590
  %v627 = vpack.c.b16 %v593, %v591
  %v628 = vpack.c.b16 %v596, %v594
  %v629 = vpack.c.b16 %v597, %v595
  %662 = vmatprep.subr.bf16.mxu0 %v599
  %663 = vmatpush1.bf16.msra.mxu0 %v598
  %664 = vmatprep.subr.bf16.mxu0 %v601
  %665 = vmatpush1.bf16.msra.mxu0 %v600
  %666 = vmatprep.subr.bf16.mxu0 %v603
  %667 = vmatpush1.bf16.msra.mxu0 %v602
  %668 = vmatprep.subr.bf16.mxu0 %v605
  %669 = vmatpush1.bf16.msra.mxu0 %v604
  %670 = vmatprep.subr.bf16.mxu0 %v607
  %671 = vmatpush1.bf16.msra.mxu0 %v606
  %672 = vmatprep.subr.bf16.mxu0 %v609
  %673 = vmatpush1.bf16.msra.mxu0 %v608
  %674 = vmatprep.subr.bf16.mxu0 %v611
  %675 = vmatpush1.bf16.msra.mxu0 %v610
  %676 = vmatprep.subr.bf16.mxu0 %v613
  %677 = vmatpush1.bf16.msra.mxu0 %v612
  %678 = vmatprep.subr.bf16.mxu0 %v615
  %679 = vmatpush1.bf16.msra.mxu0 %v614
  %680 = vmatprep.subr.bf16.mxu0 %v617
  %681 = vmatpush1.bf16.msra.mxu0 %v616
  %682 = vmatprep.subr.bf16.mxu0 %v619
  %683 = vmatpush1.bf16.msra.mxu0 %v618
  %684 = vmatprep.subr.bf16.mxu0 %v621
  %685 = vmatpush1.bf16.msra.mxu0 %v620
  %686 = vmatprep.subr.bf16.mxu0 %v623
  %687 = vmatpush1.bf16.msra.mxu0 %v622
  %688 = vmatprep.subr.bf16.mxu0 %v625
  %689 = vmatpush1.bf16.msra.mxu0 %v624
  %690 = vmatprep.subr.bf16.mxu0 %v627
  %691 = vmatpush1.bf16.msra.mxu0 %v626
  %692 = vmatprep.subr.bf16.mxu0 %v629
  %693 = vmatpush1.bf16.msra.mxu0 %v628
  %694 = vmatprep.mubr.bf16.mxu0 %v457
  %695 = vmatmul.mubr.bf16.gmra.mrb[0].mxu0 %v456
  %v696 = vpop.f32.mrb[0].mxu0
  %v697 = vadd.f32 %v495, %v696
  %v698 = vpop.f32.mrb[0].mxu0
  %v699 = vadd.f32 %v499, %v698
  %v700 = vpop.f32.mrb[0].mxu0
  %v701 = vpop.f32.mrb[0].mxu0
  %702 = vdwg.mxu0
  %v703 = vsub.f32 0.0, %v697
  %v704 = vsub.f32 0.0, %v699
  %v705 = vmul.f32 %v703, 1.442695
  %v706 = vpow.pop %v705
  %v707 = vmul.f32 %v704, 1.442695
  %v708 = vpow.pop %v707
  %v709 = vadd.f32 %v706, 1.0
  %v710 = vadd.f32 %v708, 1.0
  %v711 = vrcp.pop %v709
  %v712 = vrcp.pop %v710
  %713 = vst [vmem:[%s9] sm:$0xff] %v711
  %vm714 = vcmask 293888
  %715 = vst.msk [vmem:[%s9 + $0x8] sm:$0xff] %vm714, %v712
  // Predicated region
  $region38: #{_lambda_.1} parent=0 // pred_check
    _
  $region39: #{_lambda_.1} parent=0 // pred_check_branch
    %717 = sbr.rel (0) target = $region41
  $region40: #{_lambda_.1} parent=0 // pred_region
    _
  $region41: #{_lambda_.1} parent=0 // pred_fallthru
    _
  // Predicated region
  $region42: #{_lambda_.1} parent=0 // pred_check
    _
  $region43: #{_lambda_.1} parent=0 // pred_check_branch
    %719 = sbr.rel (0) target = $region45
  $region44: #{_lambda_.1} parent=0 // pred_region
    _
  $region45: #{_lambda_.1} parent=0 // pred_fallthru
    _

</llo_original>
